<compile_context>
chip_gen: v5e
topology: v5e:2x2
jax: 0.10.0
libtpu: 0.0.40
codegen_flags: <defaults>
</compile_context>

<pallas_src>
import math
import functools

import numpy as np
import jax
import jax.numpy as jnp
from jax.experimental import pallas as pl
from jax.experimental.pallas import tpu as pltpu


# ------------------------------------------------------------------ helpers

def _layernorm(x, eps=1e-6):
    mu = jnp.mean(x, axis=-1, keepdims=True)
    var = jnp.mean((x - mu) ** 2, axis=-1, keepdims=True)
    return (x - mu) * jax.lax.rsqrt(var + eps)


def _round_up(v, m):
    return ((v + m - 1) // m) * m


def timestep_embedding(t, dim, max_period=10000):
    half = dim // 2
    freqs = jnp.exp(-math.log(max_period) *
                    jnp.arange(half, dtype=jnp.float32) / half)
    args = t[:, None].astype(jnp.float32) * freqs[None]
    emb = jnp.concatenate([jnp.cos(args), jnp.sin(args)], axis=-1)
    if dim % 2:
        emb = jnp.concatenate([emb, jnp.zeros_like(emb[:, :1])], axis=-1)
    return emb


# ------------------------------------------- kernel 1: t-embed + all adaLN rows

def cond_kernel(tf_ref, wt0_ref, bt0_ref, wt1_ref, bt1_ref,
                wada_ref, bada_ref, o_ref, cs_scr):
    # grid axis = adaLN row: depth transformer blocks + 1 final-layer row.
    @pl.when(pl.program_id(0) == 0)
    def _():
        h = jnp.dot(tf_ref[...].astype(jnp.bfloat16), wt0_ref[...],
                    preferred_element_type=jnp.float32) + bt0_ref[...]
        h = h * jax.nn.sigmoid(h)                                   # SiLU
        c = jnp.dot(h.astype(jnp.bfloat16), wt1_ref[...],
                    preferred_element_type=jnp.float32) + bt1_ref[...]
        cs_scr[...] = c * jax.nn.sigmoid(c)                         # SiLU(c), reused

    cs = cs_scr[...].astype(jnp.bfloat16)
    o_ref[...] = (jnp.dot(cs, wada_ref[...], preferred_element_type=jnp.float32)
                  + bada_ref[...]).astype(o_ref.dtype)


# --------------------------- kernel 2: x-embed + transformer blocks + final layer

def dit_kernel(x_in_ref, posb_ref, wx_ref, ada_ref, adaf_ref,
               wqkv_ref, wproj_ref, wm1_ref, wm2_ref, bpack_ref,
               wlin_ref, blin_ref, o_ref, x_scr,
               *, num_heads, batch, seq):
    layer = pl.program_id(0)
    M, H = x_scr.shape                      # M = batch * seq
    Hm = wm1_ref.shape[-1]
    hd = H // num_heads

    # ---- prologue (layer 0): x-embedder matmul + positional embedding ------
    @pl.when(layer == 0)
    def _():
        y = jnp.dot(x_in_ref[...].astype(jnp.bfloat16), wx_ref[...],
                    preferred_element_type=jnp.float32)
        x_scr[...] = (y.reshape(batch, seq, H) + posb_ref[...][None]).reshape(M, H)

    x = x_scr[...].reshape(batch, seq, H)    # residual stream, f32, VMEM-resident
    ada = ada_ref[...]                       # (N, 6H) precomputed adaLN row
    bias = bpack_ref[...]                    # (1, 3H + H + Hm + H) packed biases

    shift_msa = ada[:, None, 0 * H:1 * H]
    scale_msa = ada[:, None, 1 * H:2 * H]
    gate_msa = ada[:, None, 2 * H:3 * H]
    shift_mlp = ada[:, None, 3 * H:4 * H]
    scale_mlp = ada[:, None, 4 * H:5 * H]
    gate_mlp = ada[:, None, 5 * H:6 * H]

    b_qkv = bias[:, 0:3 * H]
    b_proj = bias[:, 3 * H:4 * H]
    b_m1 = bias[:, 4 * H:4 * H + Hm]
    b_m2 = bias[:, 4 * H + Hm:5 * H + Hm]

    # ---- attention branch ---------------------------------------------------
    xm = (_layernorm(x) * (1.0 + scale_msa) + shift_msa).reshape(M, H)
    # one fused QKV matmul; 1/sqrt(hd) is folded into the Q columns at init;
    # cast to bf16 ONCE right after the bias add (residual stream stays f32).
    qkv = (jnp.dot(xm.astype(jnp.bfloat16), wqkv_ref[...],
                   preferred_element_type=jnp.float32) + b_qkv)
    qkv = qkv.astype(jnp.bfloat16).reshape(batch, seq, 3 * H)

    heads = []
    for h in range(num_heads):
        qh = qkv[:, :, h * hd:(h + 1) * hd]
        kh = qkv[:, :, H + h * hd:H + (h + 1) * hd]
        vh = qkv[:, :, 2 * H + h * hd:2 * H + (h + 1) * hd]
        s = jnp.einsum("nqd,nkd->nqk", qh, kh,
                       preferred_element_type=jnp.float32)          # (N, L, L)
        s = s - jnp.max(s, axis=-1, keepdims=True)
        prob = jnp.exp(s)
        prob = prob * pl.reciprocal(jnp.sum(prob, axis=-1, keepdims=True),
                                    approx=True)
        oh = jnp.einsum("nqk,nkd->nqd", prob.astype(jnp.bfloat16), vh,
                        preferred_element_type=jnp.float32)          # (N, L, hd)
        heads.append(oh.astype(jnp.bfloat16))

    # concat heads -> ONE K=H output-projection matmul (no K=32 partial matmuls)
    o_heads = jnp.concatenate(heads, axis=-1).reshape(M, H)
    attn = jnp.dot(o_heads, wproj_ref[...],
                   preferred_element_type=jnp.float32) + b_proj
    x = x + gate_msa * attn.reshape(batch, seq, H)

    # ---- MLP branch ----------------------------------------------------------
    xm = (_layernorm(x) * (1.0 + scale_mlp) + shift_mlp).reshape(M, H)
    h1 = (jnp.dot(xm.astype(jnp.bfloat16), wm1_ref[...],
                  preferred_element_type=jnp.float32) + b_m1).astype(jnp.bfloat16)
    h1 = jax.nn.gelu(h1, approximate=True)                           # GELU(tanh)
    h2 = jnp.dot(h1, wm2_ref[...], preferred_element_type=jnp.float32) + b_m2
    x = x + gate_mlp * h2.reshape(batch, seq, H)

    x_scr[...] = x.reshape(M, H)

    # ---- epilogue (last layer): final adaLN LayerNorm + output linear -------
    @pl.when(layer == pl.num_programs(0) - 1)
    def _():
        adaf = adaf_ref[...]                  # (N, 6H); only first 2H lanes used
        shift = adaf[:, None, 0:H]
        scale = adaf[:, None, H:2 * H]
        xf = (_layernorm(x) * (1.0 + scale) + shift).reshape(M, H)
        out = jnp.dot(xf.astype(jnp.bfloat16), wlin_ref[...],
                      preferred_element_type=jnp.float32) + blin_ref[...]
        o_ref[...] = out.astype(o_ref.dtype)


# ------------------------------------------------------------------ wrappers

def cond_adaln(t_freq, p):
    N, F = t_freq.shape
    H = p["hidden"]
    Dp1 = p["w_ada_all"].shape[0]
    return pl.pallas_call(
        cond_kernel,
        out_shape=jax.ShapeDtypeStruct((Dp1, N, 6 * H), jnp.float32),
        grid=(Dp1,),
        in_specs=[
            pl.BlockSpec((N, F), lambda l: (0, 0)),
            pl.BlockSpec((F, H), lambda l: (0, 0)),
            pl.BlockSpec((1, H), lambda l: (0, 0)),
            pl.BlockSpec((H, H), lambda l: (0, 0)),
            pl.BlockSpec((1, H), lambda l: (0, 0)),
            pl.BlockSpec((None, H, 6 * H), lambda l: (l, 0, 0)),
            pl.BlockSpec((None, 1, 6 * H), lambda l: (l, 0, 0)),
        ],
        out_specs=pl.BlockSpec((None, N, 6 * H), lambda l: (l, 0, 0)),
        scratch_shapes=[pltpu.VMEM((N, H), jnp.float32)],
        compiler_params=pltpu.CompilerParams(dimension_semantics=("arbitrary",)),
    )(t_freq, p["w_t0"], p["b_t0"], p["w_t1"], p["b_t1"],
      p["w_ada_all"], p["b_ada_all"])


def run_dit(x2, ada_all, p, batch, seq):
    M, C = x2.shape
    H = p["hidden"]
    Hm = p["mlp_hidden"]
    D = p["depth"]
    Cp = p["out_padded"]
    BT = 5 * H + Hm
    kern = functools.partial(dit_kernel, num_heads=p["num_heads"],
                             batch=batch, seq=seq)
    return pl.pallas_call(
        kern,
        out_shape=jax.ShapeDtypeStruct((M, Cp), jnp.float32),
        grid=(D,),
        in_specs=[
            # constant-index inputs: fetched once, reused across all layers
            pl.BlockSpec((M, C), lambda l: (0, 0)),                     # raw tokens
            pl.BlockSpec((seq, H), lambda l: (0, 0)),                   # pos + b_x
            pl.BlockSpec((C, H), lambda l: (0, 0)),                     # x-embed W
            # per-layer streamed inputs (6 per step)
            pl.BlockSpec((None, batch, 6 * H), lambda l: (l, 0, 0)),    # block adaLN
            pl.BlockSpec((None, batch, 6 * H), lambda l: (D, 0, 0)),    # final adaLN
            pl.BlockSpec((None, H, 3 * H), lambda l: (l, 0, 0)),        # w_qkv
            pl.BlockSpec((None, H, H), lambda l: (l, 0, 0)),            # w_proj
            pl.BlockSpec((None, H, Hm), lambda l: (l, 0, 0)),           # w_mlp1
            pl.BlockSpec((None, Hm, H), lambda l: (l, 0, 0)),           # w_mlp2
            pl.BlockSpec((None, 1, BT), lambda l: (l, 0, 0)),           # packed biases
            # final-layer weights (constant index, prefetched behind last block)
            pl.BlockSpec((H, Cp), lambda l: (0, 0)),
            pl.BlockSpec((1, Cp), lambda l: (0, 0)),
        ],
        out_specs=pl.BlockSpec((M, Cp), lambda l: (0, 0)),
        scratch_shapes=[pltpu.VMEM((M, H), jnp.float32)],
        compiler_params=pltpu.CompilerParams(dimension_semantics=("arbitrary",)),
    )(x2, p["posb"], p["w_x"], ada_all, ada_all,
      p["w_qkv"], p["w_proj"], p["w_mlp1"], p["w_mlp2"], p["b_pack"],
      p["w_lin_f"], p["b_lin_f"])


def dit_forward(p, x, t):
    N, L, C = x.shape
    tf = timestep_embedding(t, p["freq_dim"])
    ada_all = cond_adaln(tf, p)                                 # (D+1, N, 6H)
    out = run_dit(x.reshape(N * L, C), ada_all, p, N, L)        # (N*L, Cp)
    return out[:, :p["out_channels"]].reshape(N, L, p["out_channels"])


# -------------------------------------------------------- pure-JAX reference

def ref_forward(p, x, t):
    hi = jax.lax.Precision.HIGHEST

    def ln(z):
        mu = z.mean(-1, keepdims=True)
        var = ((z - mu) ** 2).mean(-1, keepdims=True)
        return (z - mu) / jnp.sqrt(var + 1e-6)

    H, nh = p["hidden"], p["num_heads"]
    hd = H // nh
    xe = jnp.dot(x, p["w_x"], precision=hi) + p["b_x"] + p["pos_embed"]
    tf = timestep_embedding(t, p["freq_dim"])
    h = jnp.dot(tf, p["w_t0"], precision=hi) + p["b_t0"]
    h = h * jax.nn.sigmoid(h)
    c = jnp.dot(h, p["w_t1"], precision=hi) + p["b_t1"]
    cs = c * jax.nn.sigmoid(c)

    depth = p["w_qkv"].shape[0]
    for d in range(depth):
        ada = jnp.dot(cs, p["w_ada"][d], precision=hi) + p["b_ada"][d]
        sm, scm, gm, sml, scml, gml = jnp.split(ada, 6, axis=1)
        xm = ln(xe) * (1 + scm[:, None, :]) + sm[:, None, :]
        qkv = jnp.dot(xm, p["w_qkv"][d], precision=hi) + p["b_qkv"][d]
        q, k, v = jnp.split(qkv, 3, axis=-1)
        N, L, _ = q.shape
        q = q.reshape(N, L, nh, hd).transpose(0, 2, 1, 3)
        k = k.reshape(N, L, nh, hd).transpose(0, 2, 1, 3)
        v = v.reshape(N, L, nh, hd).transpose(0, 2, 1, 3)
        s = jnp.einsum("nhqd,nhkd->nhqk", q, k, precision=hi) / math.sqrt(hd)
        pa = jax.nn.softmax(s, axis=-1)
        o = jnp.einsum("nhqk,nhkd->nhqd", pa, v, precision=hi)
        o = o.transpose(0, 2, 1, 3).reshape(N, L, H)
        o = jnp.dot(o, p["w_proj"][d], precision=hi) + p["b_proj"][d]
        xe = xe + gm[:, None, :] * o
        xm = ln(xe) * (1 + scml[:, None, :]) + sml[:, None, :]
        h1 = jax.nn.gelu(jnp.dot(xm, p["w_mlp1"][d], precision=hi) + p["b_mlp1"][d],
                         approximate=True)
        xe = xe + gml[:, None, :] * (jnp.dot(h1, p["w_mlp2"][d], precision=hi)
                                     + p["b_mlp2"][d])

    ada = jnp.dot(cs, p["w_ada_f"], precision=hi) + p["b_ada_f"]
    sh, sc = jnp.split(ada, 2, axis=1)
    xm = ln(xe) * (1 + sc[:, None, :]) + sh[:, None, :]
    return jnp.dot(xm, p["w_lin_f"], precision=hi) + p["b_lin_f"]


# ------------------------------------------------------------------ params

def init_params(key, *, C_in, H, depth, num_heads, mlp_ratio, L, F):
    """Raw (reference-layout) params; weights bf16-representable, biases small."""
    Hm = int(H * mlp_ratio)
    C_out = C_in  # learn_sigma=False

    def w(k, shape):
        fan_in = shape[-2]
        v = jax.random.normal(k, shape) * (fan_in ** -0.5)
        return v.astype(jnp.bfloat16).astype(jnp.float32)   # bf16-representable

    def b(k, shape):
        return (0.05 * jax.random.normal(k, shape)).astype(jnp.float32)

    ks = iter(jax.random.split(key, 32))
    p = dict(hidden=H, num_heads=num_heads, freq_dim=F, mlp_hidden=Hm)
    p["w_x"] = w(next(ks), (C_in, H))
    p["b_x"] = b(next(ks), (1, H))
    p["pos_embed"] = (0.02 * jax.random.normal(next(ks), (L, H))).astype(jnp.float32)
    p["w_t0"] = w(next(ks), (F, H))
    p["b_t0"] = b(next(ks), (1, H))
    p["w_t1"] = w(next(ks), (H, H))
    p["b_t1"] = b(next(ks), (1, H))
    p["w_ada"] = w(next(ks), (depth, H, 6 * H))
    p["b_ada"] = b(next(ks), (depth, 1, 6 * H))
    p["w_qkv"] = w(next(ks), (depth, H, 3 * H))
    p["b_qkv"] = b(next(ks), (depth, 1, 3 * H))
    p["w_proj"] = w(next(ks), (depth, H, H))
    p["b_proj"] = b(next(ks), (depth, 1, H))
    p["w_mlp1"] = w(next(ks), (depth, H, Hm))
    p["b_mlp1"] = b(next(ks), (depth, 1, Hm))
    p["w_mlp2"] = w(next(ks), (depth, Hm, H))
    p["b_mlp2"] = b(next(ks), (depth, 1, H))
    p["w_ada_f"] = w(next(ks), (H, 2 * H))
    p["b_ada_f"] = b(next(ks), (1, 2 * H))
    p["w_lin_f"] = w(next(ks), (H, C_out))
    p["b_lin_f"] = b(next(ks), (1, C_out))
    return p


def pack_params(raw):
    """One-time layout plumbing: bf16 weights, lane padding, scale folding,
    bias packing, adaLN (blocks + final) concatenation."""
    H = raw["hidden"]
    nh = raw["num_heads"]
    hd = H // nh
    D = raw["w_qkv"].shape[0]
    Hm = raw["w_mlp1"].shape[-1]
    C_out = raw["w_lin_f"].shape[-1]
    Cp = _round_up(C_out, 128)
    bf = lambda a: a.astype(jnp.bfloat16)

    # fold 1/sqrt(hd) into the Q columns of w_qkv / b_qkv
    col_scale = jnp.concatenate(
        [jnp.full((H,), 1.0 / math.sqrt(hd), jnp.float32),
         jnp.ones((2 * H,), jnp.float32)])
    w_qkv = raw["w_qkv"] * col_scale[None, None, :]
    b_qkv = raw["b_qkv"] * col_scale[None, None, :]

    # pack the four per-layer biases into one lane-aligned row per layer
    b_pack = jnp.concatenate(
        [b_qkv, raw["b_proj"], raw["b_mlp1"], raw["b_mlp2"]], axis=-1)

    # final-layer adaLN appended as row D (zero-padded 2H -> 6H columns)
    w_ada_f = jnp.pad(raw["w_ada_f"], ((0, 0), (0, 4 * H)))
    b_ada_f = jnp.pad(raw["b_ada_f"], ((0, 0), (0, 4 * H)))
    w_ada_all = jnp.concatenate([raw["w_ada"], w_ada_f[None]], axis=0)
    b_ada_all = jnp.concatenate([raw["b_ada"], b_ada_f[None]], axis=0)

    # lane-pad final linear -> the output store is lane-dense (unmasked vst)
    w_lin = jnp.pad(raw["w_lin_f"], ((0, 0), (0, Cp - C_out)))
    b_lin = jnp.pad(raw["b_lin_f"], ((0, 0), (0, Cp - C_out)))

    return dict(
        hidden=H, num_heads=nh, freq_dim=raw["freq_dim"], mlp_hidden=Hm,
        depth=D, out_channels=C_out, out_padded=Cp,
        w_x=bf(raw["w_x"]),
        posb=(raw["pos_embed"] + raw["b_x"]).astype(jnp.float32),
        w_t0=bf(raw["w_t0"]), b_t0=raw["b_t0"],
        w_t1=bf(raw["w_t1"]), b_t1=raw["b_t1"],
        w_ada_all=bf(w_ada_all), b_ada_all=b_ada_all,
        w_qkv=bf(w_qkv), w_proj=bf(raw["w_proj"]),
        w_mlp1=bf(raw["w_mlp1"]), w_mlp2=bf(raw["w_mlp2"]),
        b_pack=b_pack,
        w_lin_f=bf(w_lin), b_lin_f=b_lin,
    )


# ------------------------------------------------------------------ main

if __name__ == "__main__":
    # small DiT: batch=2, latent_num=64, in_channels=16, hidden=128, heads=4, depth=2
    N, L, C_in, H, depth, heads, F = 2, 64, 16, 128, 2, 4, 256
    key = jax.random.PRNGKey(0)
    kp, kx, kt = jax.random.split(key, 3)

    raw = init_params(kp, C_in=C_in, H=H, depth=depth, num_heads=heads,
                      mlp_ratio=4.0, L=L, F=F)
    packed = pack_params(raw)

    x = jax.random.normal(kx, (N, L, C_in), dtype=jnp.float32)
    t = jax.random.uniform(kt, (N,), dtype=jnp.float32) * 1000.0

    out = dit_forward(packed, x, t)
    out = jax.block_until_ready(out)
    assert out.shape == (N, L, C_in)

    # correctness check vs pure-JAX f32 reference (bf16 MXU inputs, bf16 gelu and
    # approx reciprocal in the kernel -> loose tolerance)
    ref = ref_forward(raw, x, t)
    np.testing.assert_allclose(np.asarray(out), np.asarray(ref),
                               rtol=5e-2, atol=2e-2)

    print("KERNEL_OK")
</pallas_src>

<mosaic_0001>
module attributes {stable_mosaic.version = 11 : i64} {
  func.func @cond_kernel(%arg0: i32, %arg1: memref<2x256xf32, #tpu.memory_space<vmem>>, %arg2: memref<256x128xbf16, #tpu.memory_space<vmem>>, %arg3: memref<1x128xf32, #tpu.memory_space<vmem>>, %arg4: memref<128x128xbf16, #tpu.memory_space<vmem>>, %arg5: memref<1x128xf32, #tpu.memory_space<vmem>>, %arg6: memref<1x128x768xbf16, #tpu.memory_space<vmem>>, %arg7: memref<1x1x768xf32, #tpu.memory_space<vmem>>, %arg8: memref<1x2x768xf32, #tpu.memory_space<vmem>>, %arg9: memref<2x128xf32, #tpu.memory_space<vmem>>) attributes {dimension_semantics = [#tpu.dimension_semantics<arbitrary>], iteration_bounds = array<i64: 3>, scalar_prefetch = 0 : i64, scratch_operands = 1 : i64, tpu.core_type = #tpu.core_type<tc>, window_params = [{pipeline_mode = #tpu.pipeline_mode<synchronous>, transform_indices = @transform_0, window_bounds = array<i64: 2, 256>}, {pipeline_mode = #tpu.pipeline_mode<synchronous>, transform_indices = @transform_1, window_bounds = array<i64: 256, 128>}, {pipeline_mode = #tpu.pipeline_mode<synchronous>, transform_indices = @transform_2, window_bounds = array<i64: 1, 128>}, {pipeline_mode = #tpu.pipeline_mode<synchronous>, transform_indices = @transform_3, window_bounds = array<i64: 128, 128>}, {pipeline_mode = #tpu.pipeline_mode<synchronous>, transform_indices = @transform_4, window_bounds = array<i64: 1, 128>}, {transform_indices = @transform_5, window_bounds = array<i64: 1, 128, 768>}, {transform_indices = @transform_6, window_bounds = array<i64: 1, 1, 768>}, {transform_indices = @transform_7, window_bounds = array<i64: 1, 2, 768>}]} {
    %c0_i32 = arith.constant 0 : i32
    %0 = arith.cmpi eq, %arg0, %c0_i32 : i32
    %1 = arith.extui %0 : i1 to i32
    %c0_i32_0 = arith.constant 0 : i32
    %2 = arith.cmpi ne, %1, %c0_i32_0 : i32
    scf.if %2 {
      %c0_11 = arith.constant 0 : index
      %c0_12 = arith.constant 0 : index
      %15 = vector.load %arg1[%c0_11, %c0_12] : memref<2x256xf32, #tpu.memory_space<vmem>>, vector<2x256xf32>
      %16 = arith.truncf %15 : vector<2x256xf32> to vector<2x256xbf16>
      %c0_13 = arith.constant 0 : index
      %c0_14 = arith.constant 0 : index
      %17 = vector.load %arg2[%c0_13, %c0_14] : memref<256x128xbf16, #tpu.memory_space<vmem>>, vector<256x128xbf16>
      %cst_15 = arith.constant dense<0.000000e+00> : vector<2x128xf32>
      %18 = tpu.matmul %16, %17, %cst_15 {dimension_numbers = #tpu.dot_dimension_numbers<[1], [0], [0], [1], [0, 0, 1, 1], [], []>} : vector<2x256xbf16>, vector<256x128xbf16>, vector<2x128xf32> -> vector<2x128xf32>
      %c0_16 = arith.constant 0 : index
      %c0_17 = arith.constant 0 : index
      %19 = vector.load %arg3[%c0_16, %c0_17] : memref<1x128xf32, #tpu.memory_space<vmem>>, vector<1x128xf32>
      %20 = vector.broadcast %19 : vector<1x128xf32> to vector<2x128xf32>
      %21 = arith.addf %18, %20 : vector<2x128xf32>
      %22 = arith.negf %21 : vector<2x128xf32>
      %23 = math.exp %22 : vector<2x128xf32>
      %cst_18 = arith.constant 1.000000e+00 : f32
      %24 = vector.broadcast %cst_18 : f32 to vector<2x128xf32>
      %25 = arith.addf %24, %23 : vector<2x128xf32>
      %26 = arith.divf %24, %25 : vector<2x128xf32>
      %27 = arith.mulf %21, %26 : vector<2x128xf32>
      %28 = arith.truncf %27 : vector<2x128xf32> to vector<2x128xbf16>
      %c0_19 = arith.constant 0 : index
      %c0_20 = arith.constant 0 : index
      %29 = vector.load %arg4[%c0_19, %c0_20] : memref<128x128xbf16, #tpu.memory_space<vmem>>, vector<128x128xbf16>
      %cst_21 = arith.constant dense<0.000000e+00> : vector<2x128xf32>
      %30 = tpu.matmul %28, %29, %cst_21 {dimension_numbers = #tpu.dot_dimension_numbers<[1], [0], [0], [1], [0, 0, 1, 1], [], []>} : vector<2x128xbf16>, vector<128x128xbf16>, vector<2x128xf32> -> vector<2x128xf32>
      %c0_22 = arith.constant 0 : index
      %c0_23 = arith.constant 0 : index
      %31 = vector.load %arg5[%c0_22, %c0_23] : memref<1x128xf32, #tpu.memory_space<vmem>>, vector<1x128xf32>
      %32 = vector.broadcast %31 : vector<1x128xf32> to vector<2x128xf32>
      %33 = arith.addf %30, %32 : vector<2x128xf32>
      %34 = arith.negf %33 : vector<2x128xf32>
      %35 = math.exp %34 : vector<2x128xf32>
      %cst_24 = arith.constant 1.000000e+00 : f32
      %36 = vector.broadcast %cst_24 : f32 to vector<2x128xf32>
      %37 = arith.addf %36, %35 : vector<2x128xf32>
      %38 = arith.divf %36, %37 : vector<2x128xf32>
      %39 = arith.mulf %33, %38 : vector<2x128xf32>
      %c0_25 = arith.constant 0 : index
      %c0_26 = arith.constant 0 : index
      %40 = vector.load %arg9[%c0_25, %c0_26] : memref<2x128xf32, #tpu.memory_space<vmem>>, vector<2x128xf32>
      tpu.vector_store %arg9[%c0_25, %c0_26], %39 {strides = array<i32>} : memref<2x128xf32, #tpu.memory_space<vmem>>, vector<2x128xf32>,
    } else {
    }
    %c0 = arith.constant 0 : index
    %c0_1 = arith.constant 0 : index
    %3 = vector.load %arg9[%c0, %c0_1] : memref<2x128xf32, #tpu.memory_space<vmem>>, vector<2x128xf32>
    %4 = arith.truncf %3 : vector<2x128xf32> to vector<2x128xbf16>
    %c0_2 = arith.constant 0 : index
    %c0_3 = arith.constant 0 : index
    %c0_4 = arith.constant 0 : index
    %5 = vector.load %arg6[%c0_2, %c0_3, %c0_4] : memref<1x128x768xbf16, #tpu.memory_space<vmem>>, vector<1x128x768xbf16>
    %6 = vector.shape_cast %5 : vector<1x128x768xbf16> to vector<128x768xbf16>
    %cst = arith.constant dense<0.000000e+00> : vector<2x768xf32>
    %7 = tpu.matmul %4, %6, %cst {dimension_numbers = #tpu.dot_dimension_numbers<[1], [0], [0], [1], [0, 0, 1, 1], [], []>} : vector<2x128xbf16>, vector<128x768xbf16>, vector<2x768xf32> -> vector<2x768xf32>
    %c0_5 = arith.constant 0 : index
    %c0_6 = arith.constant 0 : index
    %c0_7 = arith.constant 0 : index
    %8 = vector.load %arg7[%c0_5, %c0_6, %c0_7] : memref<1x1x768xf32, #tpu.memory_space<vmem>>, vector<1x1x768xf32>
    %9 = vector.shape_cast %8 : vector<1x1x768xf32> to vector<1x768xf32>
    %10 = vector.broadcast %9 : vector<1x768xf32> to vector<2x768xf32>
    %11 = arith.addf %7, %10 : vector<2x768xf32>
    %c0_8 = arith.constant 0 : index
    %c0_9 = arith.constant 0 : index
    %c0_10 = arith.constant 0 : index
    %12 = vector.load %arg8[%c0_8, %c0_9, %c0_10] : memref<1x2x768xf32, #tpu.memory_space<vmem>>, vector<1x2x768xf32>
    %13 = vector.shape_cast %12 : vector<1x2x768xf32> to vector<2x768xf32>
    %14 = vector.shape_cast %11 : vector<2x768xf32> to vector<1x2x768xf32>
    tpu.vector_store %arg8[%c0_8, %c0_9, %c0_10], %14 {strides = array<i32>} : memref<1x2x768xf32, #tpu.memory_space<vmem>>, vector<1x2x768xf32>,
    return
  }
  func.func @transform_0(%arg0: i32) -> (i32, i32) {
    %c0_i32 = arith.constant 0 : i32
    %c0_i32_0 = arith.constant 0 : i32
    %c0_i32_1 = arith.constant 0 : i32
    return %c0_i32, %c0_i32_0 : i32, i32
  }
  func.func @transform_1(%arg0: i32) -> (i32, i32) {
    %c0_i32 = arith.constant 0 : i32
    %c0_i32_0 = arith.constant 0 : i32
    %c0_i32_1 = arith.constant 0 : i32
    return %c0_i32, %c0_i32_0 : i32, i32
  }
  func.func @transform_2(%arg0: i32) -> (i32, i32) {
    %c0_i32 = arith.constant 0 : i32
    %c0_i32_0 = arith.constant 0 : i32
    %c0_i32_1 = arith.constant 0 : i32
    return %c0_i32, %c0_i32_0 : i32, i32
  }
  func.func @transform_3(%arg0: i32) -> (i32, i32) {
    %c0_i32 = arith.constant 0 : i32
    %c0_i32_0 = arith.constant 0 : i32
    %c0_i32_1 = arith.constant 0 : i32
    return %c0_i32, %c0_i32_0 : i32, i32
  }
  func.func @transform_4(%arg0: i32) -> (i32, i32) {
    %c0_i32 = arith.constant 0 : i32
    %c0_i32_0 = arith.constant 0 : i32
    %c0_i32_1 = arith.constant 0 : i32
    return %c0_i32, %c0_i32_0 : i32, i32
  }
  func.func @transform_5(%arg0: i32) -> (i32, i32, i32) {
    %c0_i32 = arith.constant 0 : i32
    %c0_i32_0 = arith.constant 0 : i32
    %c0_i32_1 = arith.constant 0 : i32
    return %arg0, %c0_i32, %c0_i32_0 : i32, i32, i32
  }
  func.func @transform_6(%arg0: i32) -> (i32, i32, i32) {
    %c0_i32 = arith.constant 0 : i32
    %c0_i32_0 = arith.constant 0 : i32
    %c0_i32_1 = arith.constant 0 : i32
    return %arg0, %c0_i32, %c0_i32_0 : i32, i32, i32
  }
  func.func @transform_7(%arg0: i32) -> (i32, i32, i32) {
    %c0_i32 = arith.constant 0 : i32
    %c0_i32_0 = arith.constant 0 : i32
    %c0_i32_1 = arith.constant 0 : i32
    return %arg0, %c0_i32, %c0_i32_0 : i32, i32, i32
  }
}

</mosaic_0001>

<llo_original>
// kernel: tpu_custom_call.1
$region0: #{tpu_custom_call.1}
  #allocation0 [shape = 'u32[]', space=smem, size = 0x4, offset = 0x4, fixed_abs, tag = 'smem constant byte address 0x4 - core index']
  #allocation1 [shape = 'u32[72,128]{1,0:T(1,128)}', space=vmem, size = 0x9000, scoped, tag = 'internal scratch']
  #allocation2 [shape = 'f32[2,128]{1,0:T(2,128)}', space=vmem, size = 0x400, scoped, tag = 'scratch operand']
  %s0 = inlined_call_operand.hbm [shape: f32[2,256], index: 0, kind: input, shape index: {}]
  %s1 = inlined_call_operand.hbm [shape: bf16[256,128], index: 1, kind: input, shape index: {}]
  %s2 = inlined_call_operand.vmem [shape: f32[1,128], index: 2, kind: input, shape index: {}]
  %s3 = inlined_call_operand.hbm [shape: bf16[128,128], index: 3, kind: input, shape index: {}]
  %s4 = inlined_call_operand.vmem [shape: f32[1,128], index: 4, kind: input, shape index: {}]
  %s5 = inlined_call_operand.hbm [shape: bf16[3,128,768], index: 5, kind: input, shape index: {}]
  %s6 = inlined_call_operand.hbm [shape: f32[3,1,768], index: 6, kind: input, shape index: {}]
  %s7 = inlined_call_operand.hbm [shape: f32[3,2,768], index: 7, kind: output, shape index: {}]
  %s8 = sld [smem:[#allocation0]]
  $region85: #{tpu_custom_call.1} parent=0
    _
  %s10 = ssub.s32 1, %s8
  %s11 = scalar_select 0, %s10, %s8
  $region1: #{tpu_custom_call.1} parent=0
    #allocation3 [shape = 'u8[2048]{0}', space=vmem, size = 0x800, scoped, tag = 'input window, operand 0, single buffered']
    #allocation4 [shape = 's32[2]{0}', space=sflag, size = 0x8, scoped, tag = 'scoped memory for tpu_custom_call.1']
    #allocation5 [shape = 's32[2]{0}', space=sflag, size = 0x8, scoped, tag = 'scoped memory for tpu_custom_call.1']
    #allocation6 [shape = 'u8[65536]{0}', space=vmem, size = 0x10000, scoped, tag = 'input window, operand 1, single buffered']
    #allocation7 [shape = 's32[1]{0}', space=sflag, size = 0x4, scoped, tag = 'scoped memory for tpu_custom_call.1']
    #allocation8 [shape = 'u8[32768]{0}', space=vmem, size = 0x8000, scoped, tag = 'input window, operand 3, single buffered']
    #allocation9 [shape = 'u8[393216]{0}', space=vmem, size = 0x60000, scoped, tag = 'input window, operand 5']
    #allocation10 [shape = 's32[2]{0}', space=sflag, size = 0x8, scoped, tag = 'scoped memory for tpu_custom_call.1']
    #allocation11 [shape = 'u8[6144]{0}', space=vmem, size = 0x1800, scoped, tag = 'input window, operand 6']
    #allocation12 [shape = 'u8[12288]{0}', space=vmem, size = 0x3000, scoped, tag = 'output window, operand 0']
    %12 = vsyncpa [#allocation4], 0
    %13 = vsyncpa [#allocation7], 0
    %14 = vsyncpa [#allocation10], 0
    %s15 = scalar_lea.sflag [#allocation10], 1
    %16 = vsyncpa %s15, 0
    %17 = vsyncpa [#allocation5], 0
    %s18 = scalar_lea.sflag [#allocation5], 1
    %19 = vsyncpa %s18, 0
    loop: start=0, step=1, limit=5
    $region2: #{tpu_custom_call.1} parent=1 // loop_pre_header
      _
    $region3: #{tpu_custom_call.1} parent=1 // loop_header
      %s21 = sphi 0, %s25
      %p22 = scmp.ge.s32.totalorder %s21, 5
      %s29 = sphi 0, %s29
      %s31 = sphi 0, %s29
      %s32 = sphi 0, %s31
      %s46 = sphi 0, %s32
      %s50 = sphi 0, %s50
      %s52 = sphi 0, %s50
      %s53 = sphi 0, %s52
      %s67 = sphi 0, %s53
      %s71 = sphi 0, %s71
      %s73 = sphi 0, %s71
      %s74 = sphi 0, %s73
      %s88 = sphi 0, %s74
      %s92 = sphi 0, %s92
      %s94 = sphi 0, %s92
      %s95 = sphi 0, %s94
      %s109 = sphi 0, %s95
      %s113 = sphi 0, %s113
      %s115 = sphi 0, %s113
      %s116 = sphi 0, %s115
      %s130 = sphi 0, %s116
      %s136 = sphi 0, %s138
      %s139 = sphi 0, %s136
      %s140 = sphi 0, %s139
      %s156 = sphi 0, %s140
      %s162 = sphi 0, %s164
      %s165 = sphi 0, %s162
      %s166 = sphi 0, %s165
      %s182 = sphi 0, %s166
      %s188 = sphi 0, %s190
      %s191 = sphi 0, %s188
      %s192 = sphi 0, %s191
      %s208 = sphi 0, %s192
    $region4: #{tpu_custom_call.1} parent=1 // loop_header_branch
      %24 = sbr.rel (%p22) target = $region8
    $region5: #{tpu_custom_call.1} parent=1 // loop_body
      %s26 = ssub.s32 %s21, 1
      %s27 = ssub.s32 %s21, 2
      %s28 = sadd.s32 %s21, 1
      %s30 = sadd.s32 %s29, 1
      %p33 = scmp.eq.s32.totalorder %s21, 2
      %p34 = scmp.ne.s32.totalorder %s29, %s31
      %p35 = scmp.eq.s32.totalorder %s21, 0
      %p36 = por %p34, %p35
      %p37 = scmp.ne.s32.totalorder %s29, %s31
      %p38 = scmp.eq.s32.totalorder %s26, 2
      %p39 = por %p37, %p38
      %p40 = scmp.ne.s32.totalorder %s31, %s32
      %p41 = scmp.eq.s32.totalorder %s26, 0
      %p42 = por %p40, %p41
      %p43 = scmp.ne.s32.totalorder %s31, %s32
      %p44 = scmp.eq.s32.totalorder %s27, 2
      %p45 = por %p43, %p44
      %p47 = scmp.ne.s32.totalorder %s32, %s46
      %p48 = scmp.eq.s32.totalorder %s27, 0
      %p49 = por %p47, %p48
      %s51 = sadd.s32 %s50, 1
      %p54 = scmp.eq.s32.totalorder %s21, 2
      %p55 = scmp.ne.s32.totalorder %s50, %s52
      %p56 = scmp.eq.s32.totalorder %s21, 0
      %p57 = por %p55, %p56
      %p58 = scmp.ne.s32.totalorder %s50, %s52
      %p59 = scmp.eq.s32.totalorder %s26, 2
      %p60 = por %p58, %p59
      %p61 = scmp.ne.s32.totalorder %s52, %s53
      %p62 = scmp.eq.s32.totalorder %s26, 0
      %p63 = por %p61, %p62
      %p64 = scmp.ne.s32.totalorder %s52, %s53
      %p65 = scmp.eq.s32.totalorder %s27, 2
      %p66 = por %p64, %p65
      %p68 = scmp.ne.s32.totalorder %s53, %s67
      %p69 = scmp.eq.s32.totalorder %s27, 0
      %p70 = por %p68, %p69
      %s72 = sadd.s32 %s71, 1
      %p75 = scmp.eq.s32.totalorder %s21, 2
      %p76 = scmp.ne.s32.totalorder %s71, %s73
      %p77 = scmp.eq.s32.totalorder %s21, 0
      %p78 = por %p76, %p77
      %p79 = scmp.ne.s32.totalorder %s71, %s73
      %p80 = scmp.eq.s32.totalorder %s26, 2
      %p81 = por %p79, %p80
      %p82 = scmp.ne.s32.totalorder %s73, %s74
      %p83 = scmp.eq.s32.totalorder %s26, 0
      %p84 = por %p82, %p83
      %p85 = scmp.ne.s32.totalorder %s73, %s74
      %p86 = scmp.eq.s32.totalorder %s27, 2
      %p87 = por %p85, %p86
      %p89 = scmp.ne.s32.totalorder %s74, %s88
      %p90 = scmp.eq.s32.totalorder %s27, 0
      %p91 = por %p89, %p90
      %s93 = sadd.s32 %s92, 1
      %p96 = scmp.eq.s32.totalorder %s21, 2
      %p97 = scmp.ne.s32.totalorder %s92, %s94
      %p98 = scmp.eq.s32.totalorder %s21, 0
      %p99 = por %p97, %p98
      %p100 = scmp.ne.s32.totalorder %s92, %s94
      %p101 = scmp.eq.s32.totalorder %s26, 2
      %p102 = por %p100, %p101
      %p103 = scmp.ne.s32.totalorder %s94, %s95
      %p104 = scmp.eq.s32.totalorder %s26, 0
      %p105 = por %p103, %p104
      %p106 = scmp.ne.s32.totalorder %s94, %s95
      %p107 = scmp.eq.s32.totalorder %s27, 2
      %p108 = por %p106, %p107
      %p110 = scmp.ne.s32.totalorder %s95, %s109
      %p111 = scmp.eq.s32.totalorder %s27, 0
      %p112 = por %p110, %p111
      %s114 = sadd.s32 %s113, 1
      %p117 = scmp.eq.s32.totalorder %s21, 2
      %p118 = scmp.ne.s32.totalorder %s113, %s115
      %p119 = scmp.eq.s32.totalorder %s21, 0
      %p120 = por %p118, %p119
      %p121 = scmp.ne.s32.totalorder %s113, %s115
      %p122 = scmp.eq.s32.totalorder %s26, 2
      %p123 = por %p121, %p122
      %p124 = scmp.ne.s32.totalorder %s115, %s116
      %p125 = scmp.eq.s32.totalorder %s26, 0
      %p126 = por %p124, %p125
      %p127 = scmp.ne.s32.totalorder %s115, %s116
      %p128 = scmp.eq.s32.totalorder %s27, 2
      %p129 = por %p127, %p128
      %p131 = scmp.ne.s32.totalorder %s116, %s130
      %p132 = scmp.eq.s32.totalorder %s27, 0
      %p133 = por %p131, %p132
      %s134 = ssub.s32 %s21, %s28
      %p135 = scmp.eq.s32.totalorder %s134, 0
      %s137 = sadd.s32 %s136, 1
      %s138 = scalar_select %p135, %s136, %s137
      %p141 = pneg %p135
      %p142 = scmp.eq.s32.totalorder %s21, 2
      %p143 = por %p141, %p142
      %p144 = scmp.ne.s32.totalorder %s136, %s139
      %p145 = scmp.eq.s32.totalorder %s21, 0
      %p146 = por %p144, %p145
      %p147 = scmp.ne.s32.totalorder %s136, %s139
      %p148 = scmp.eq.s32.totalorder %s26, 2
      %p149 = por %p147, %p148
      %p150 = scmp.ne.s32.totalorder %s139, %s140
      %p151 = scmp.eq.s32.totalorder %s26, 0
      %p152 = por %p150, %p151
      %p153 = scmp.ne.s32.totalorder %s139, %s140
      %p154 = scmp.eq.s32.totalorder %s27, 2
      %p155 = por %p153, %p154
      %p157 = scmp.ne.s32.totalorder %s140, %s156
      %p158 = scmp.eq.s32.totalorder %s27, 0
      %p159 = por %p157, %p158
      %s160 = ssub.s32 %s21, %s28
      %p161 = scmp.eq.s32.totalorder %s160, 0
      %s163 = sadd.s32 %s162, 1
      %s164 = scalar_select %p161, %s162, %s163
      %p167 = pneg %p161
      %p168 = scmp.eq.s32.totalorder %s21, 2
      %p169 = por %p167, %p168
      %p170 = scmp.ne.s32.totalorder %s162, %s165
      %p171 = scmp.eq.s32.totalorder %s21, 0
      %p172 = por %p170, %p171
      %p173 = scmp.ne.s32.totalorder %s162, %s165
      %p174 = scmp.eq.s32.totalorder %s26, 2
      %p175 = por %p173, %p174
      %p176 = scmp.ne.s32.totalorder %s165, %s166
      %p177 = scmp.eq.s32.totalorder %s26, 0
      %p178 = por %p176, %p177
      %p179 = scmp.ne.s32.totalorder %s165, %s166
      %p180 = scmp.eq.s32.totalorder %s27, 2
      %p181 = por %p179, %p180
      %p183 = scmp.ne.s32.totalorder %s166, %s182
      %p184 = scmp.eq.s32.totalorder %s27, 0
      %p185 = por %p183, %p184
      %s186 = ssub.s32 %s21, %s28
      %p187 = scmp.eq.s32.totalorder %s186, 0
      %s189 = sadd.s32 %s188, 1
      %s190 = scalar_select %p187, %s188, %s189
      %p193 = pneg %p187
      %p194 = scmp.eq.s32.totalorder %s21, 2
      %p195 = por %p193, %p194
      %p196 = scmp.ne.s32.totalorder %s188, %s191
      %p197 = scmp.eq.s32.totalorder %s21, 0
      %p198 = por %p196, %p197
      %p199 = scmp.ne.s32.totalorder %s188, %s191
      %p200 = scmp.eq.s32.totalorder %s26, 2
      %p201 = por %p199, %p200
      %p202 = scmp.ne.s32.totalorder %s191, %s192
      %p203 = scmp.eq.s32.totalorder %s26, 0
      %p204 = por %p202, %p203
      %p205 = scmp.ne.s32.totalorder %s191, %s192
      %p206 = scmp.eq.s32.totalorder %s27, 2
      %p207 = por %p205, %p206
      %p209 = scmp.ne.s32.totalorder %s192, %s208
      %p210 = scmp.eq.s32.totalorder %s27, 0
      %p211 = por %p209, %p210
      %p212 = scmp.le.s32.totalorder 1, %s21
      %p213 = scmp.lt.s32.totalorder %s21, 4
      %p214 = pnand %p212, %p213
      %p215 = pneg %p214
      // Predicated region
      $region9: #{tpu_custom_call.1} parent=5 // pred_check
        _
      $region10: #{tpu_custom_call.1} parent=5 // pred_check_branch
        %217 = sbr.rel (%p214) target = $region12
      $region11: #{tpu_custom_call.1} parent=5 // pred_region
        %s218 = ssub.s32 %s21, 1
        // Predicated region
        $region13: #{tpu_custom_call.1} parent=11 // pred_check
          %p219 = pneg %p42
        $region14: #{tpu_custom_call.1} parent=11 // pred_check_branch
          %221 = sbr.rel (%p219) target = $region16
        $region15: #{tpu_custom_call.1} parent=11 // pred_region
          %223 = vsyncadd [#allocation4], 0
          %s225 = sshll.u32 %s0, 4
          %s226 = int_to_ptr.hbm [resolvable:$true] %s225
          %s227 = sshll.u32 [#allocation3], 4
          %s228 = int_to_ptr.vmem [resolvable:$true] %s227
          %230 = dma.hbm_to_vmem [thread:$0]  %s226, 64, %s228, [#allocation4]
        $region16: #{tpu_custom_call.1} parent=11 // pred_fallthru
          _
        // Predicated region
        $region17: #{tpu_custom_call.1} parent=11 // pred_check
          %p231 = pneg %p63
        $region18: #{tpu_custom_call.1} parent=11 // pred_check_branch
          %233 = sbr.rel (%p231) target = $region20
        $region19: #{tpu_custom_call.1} parent=11 // pred_region
          %235 = vsyncadd [#allocation7], 0
          %s236 = sshll.u32 %s1, 4
          %s237 = int_to_ptr.hbm [resolvable:$true] %s236
          %s238 = sshll.u32 [#allocation6], 4
          %s239 = int_to_ptr.vmem [resolvable:$true] %s238
          %244 = dma.hbm_to_vmem [thread:$0]  %s237, 2048, %s239, [#allocation7], 64, 64, 4
        $region20: #{tpu_custom_call.1} parent=11 // pred_fallthru
          _
        // Predicated region
        $region21: #{tpu_custom_call.1} parent=11 // pred_check
          %p245 = pneg %p84
        $region22: #{tpu_custom_call.1} parent=11 // pred_check_branch
          %247 = sbr.rel (%p245) target = $region24
        $region23: #{tpu_custom_call.1} parent=11 // pred_region
          _
        $region24: #{tpu_custom_call.1} parent=11 // pred_fallthru
          _
        // Predicated region
        $region25: #{tpu_custom_call.1} parent=11 // pred_check
          %p248 = pneg %p105
        $region26: #{tpu_custom_call.1} parent=11 // pred_check_branch
          %250 = sbr.rel (%p248) target = $region28
        $region27: #{tpu_custom_call.1} parent=11 // pred_region
          %252 = vsyncadd [#allocation7], 0
          %s253 = sshll.u32 %s3, 4
          %s254 = int_to_ptr.hbm [resolvable:$true] %s253
          %s255 = sshll.u32 [#allocation8], 4
          %s256 = int_to_ptr.vmem [resolvable:$true] %s255
          %261 = dma.hbm_to_vmem [thread:$0]  %s254, 1024, %s256, [#allocation7], 64, 64, 4
        $region28: #{tpu_custom_call.1} parent=11 // pred_fallthru
          _
        // Predicated region
        $region29: #{tpu_custom_call.1} parent=11 // pred_check
          %p262 = pneg %p126
        $region30: #{tpu_custom_call.1} parent=11 // pred_check_branch
          %264 = sbr.rel (%p262) target = $region32
        $region31: #{tpu_custom_call.1} parent=11 // pred_region
          _
        $region32: #{tpu_custom_call.1} parent=11 // pred_fallthru
          _
      $region12: #{tpu_custom_call.1} parent=5 // pred_fallthru
        _
      %p265 = scmp.lt.s32.totalorder %s21, 3
      // Predicated region
      $region33: #{tpu_custom_call.1} parent=5 // pred_check
        %p266 = pneg %p265
      $region34: #{tpu_custom_call.1} parent=5 // pred_check_branch
        %268 = sbr.rel (%p266) target = $region36
      $region35: #{tpu_custom_call.1} parent=5 // pred_region
        // Predicated region
        $region37: #{tpu_custom_call.1} parent=35 // pred_check
          %p269 = pneg %p146
        $region38: #{tpu_custom_call.1} parent=35 // pred_check_branch
          %271 = sbr.rel (%p269) target = $region40
        $region39: #{tpu_custom_call.1} parent=35 // pred_region
          %s272 = sand.u32 %s21, 1
          %s273 = scalar_lea.sflag [#allocation10], %s272
          %s274 = sand.u32 %s136, 1
          %s275 = smul.addr %s274, 384
          %s276 = scalar_lea.vmem [#allocation9], %s275
          %278 = vsyncadd %s273, 0
          %s279 = smul.addr %s21, 96
          %s280 = smul.addr %s279, 4
          %s281 = scalar_lea.hbm %s5, %s280
          %s282 = sshll.u32 %s281, 4
          %s283 = int_to_ptr.hbm [resolvable:$true] %s282
          %s284 = sshll.u32 %s276, 4
          %s285 = int_to_ptr.vmem [resolvable:$true] %s284
          %290 = dma.hbm_to_vmem [thread:$0]  %s283, 6144, %s285, %s273, 384, 384, 24
        $region40: #{tpu_custom_call.1} parent=35 // pred_fallthru
          _
        // Predicated region
        $region41: #{tpu_custom_call.1} parent=35 // pred_check
          %p291 = pneg %p172
        $region42: #{tpu_custom_call.1} parent=35 // pred_check_branch
          %293 = sbr.rel (%p291) target = $region44
        $region43: #{tpu_custom_call.1} parent=35 // pred_region
          %s294 = sand.u32 %s21, 1
          %s295 = scalar_lea.sflag [#allocation10], %s294
          %s296 = sand.u32 %s162, 1
          %s297 = smul.addr %s296, 6
          %s298 = scalar_lea.vmem [#allocation11], %s297
          %300 = vsyncadd %s295, 0
          %s301 = smul.addr %s21, 6
          %s302 = scalar_lea.hbm %s6, %s301
          %s304 = sshll.u32 %s302, 4
          %s305 = int_to_ptr.hbm [resolvable:$true] %s304
          %s306 = sshll.u32 %s298, 4
          %s307 = int_to_ptr.vmem [resolvable:$true] %s306
          %309 = dma.hbm_to_vmem [thread:$0]  %s305, 96, %s307, %s295
        $region44: #{tpu_custom_call.1} parent=35 // pred_fallthru
          _
      $region36: #{tpu_custom_call.1} parent=5 // pred_fallthru
        _
      %p310 = scmp.le.s32.totalorder 1, %s21
      %p311 = scmp.lt.s32.totalorder %s21, 4
      %p312 = pnand %p310, %p311
      %p313 = pneg %p312
      // Predicated region
      $region45: #{tpu_custom_call.1} parent=5 // pred_check
        _
      $region46: #{tpu_custom_call.1} parent=5 // pred_check_branch
        %315 = sbr.rel (%p312) target = $region48
      $region47: #{tpu_custom_call.1} parent=5 // pred_region
        %s316 = ssub.s32 %s21, 1
        // Predicated region
        $region49: #{tpu_custom_call.1} parent=47 // pred_check
          %p317 = pneg %p42
        $region50: #{tpu_custom_call.1} parent=47 // pred_check_branch
          %319 = sbr.rel (%p317) target = $region52
        $region51: #{tpu_custom_call.1} parent=47 // pred_region
          %321 = dma.done [#allocation4], 64
        $region52: #{tpu_custom_call.1} parent=47 // pred_fallthru
          _
        // Predicated region
        $region53: #{tpu_custom_call.1} parent=47 // pred_check
          %p322 = pneg %p63
        $region54: #{tpu_custom_call.1} parent=47 // pred_check_branch
          %324 = sbr.rel (%p322) target = $region56
        $region55: #{tpu_custom_call.1} parent=47 // pred_region
          %326 = dma.done [#allocation7], 2048
        $region56: #{tpu_custom_call.1} parent=47 // pred_fallthru
          _
        // Predicated region
        $region57: #{tpu_custom_call.1} parent=47 // pred_check
          %p327 = pneg %p105
        $region58: #{tpu_custom_call.1} parent=47 // pred_check_branch
          %329 = sbr.rel (%p327) target = $region60
        $region59: #{tpu_custom_call.1} parent=47 // pred_region
          %331 = dma.done [#allocation7], 1024
        $region60: #{tpu_custom_call.1} parent=47 // pred_fallthru
          _
        %s332 = sand.u32 %s26, 1
        %s333 = scalar_lea.sflag [#allocation10], %s332
        %s334 = sand.u32 %s139, 1
        %s335 = smul.addr %s334, 384
        %s336 = scalar_lea.vmem [#allocation9], %s335
        // Predicated region
        $region61: #{tpu_custom_call.1} parent=47 // pred_check
          %p337 = pneg %p152
        $region62: #{tpu_custom_call.1} parent=47 // pred_check_branch
          %339 = sbr.rel (%p337) target = $region64
        $region63: #{tpu_custom_call.1} parent=47 // pred_region
          %341 = dma.done %s333, 6144
        $region64: #{tpu_custom_call.1} parent=47 // pred_fallthru
          _
        %s342 = sand.u32 %s26, 1
        %s343 = scalar_lea.sflag [#allocation10], %s342
        %s344 = sand.u32 %s165, 1
        %s345 = smul.addr %s344, 6
        %s346 = scalar_lea.vmem [#allocation11], %s345
        // Predicated region
        $region65: #{tpu_custom_call.1} parent=47 // pred_check
          %p347 = pneg %p178
        $region66: #{tpu_custom_call.1} parent=47 // pred_check_branch
          %349 = sbr.rel (%p347) target = $region68
        $region67: #{tpu_custom_call.1} parent=47 // pred_region
          %351 = dma.done %s343, 96
        $region68: #{tpu_custom_call.1} parent=47 // pred_fallthru
          _
        %p352 = pneg %p42
        %p353 = pneg %p39
        %p354 = pneg %p63
        %p355 = pneg %p60
        %p356 = pneg %p84
        %p357 = pneg %p81
        %p358 = pneg %p105
        %p359 = pneg %p102
        %p360 = pneg %p126
        %p361 = pneg %p123
        %s362 = sand.u32 %s26, 1
        %s363 = scalar_lea.sflag [#allocation10], %s362
        %s364 = sand.u32 %s139, 1
        %s365 = smul.addr %s364, 384
        %s366 = scalar_lea.vmem [#allocation9], %s365
        %p367 = pneg %p152
        %p368 = pneg %p149
        %s369 = sand.u32 %s26, 1
        %s370 = scalar_lea.sflag [#allocation10], %s369
        %s371 = sand.u32 %s165, 1
        %s372 = smul.addr %s371, 6
        %s373 = scalar_lea.vmem [#allocation11], %s372
        %p374 = pneg %p178
        %p375 = pneg %p175
        %p376 = pneg %p204
        %p377 = pneg %p201
        %s378 = sand.u32 %s191, 1
        %s379 = scalar_lea.sflag [#allocation5], %s378
        %s380 = sand.u32 %s191, 1
        %s381 = smul.addr %s380, 12
        %s382 = scalar_lea.vmem [#allocation12], %s381
        %p383 = scmp.eq.s32.totalorder %s26, 0
        // Predicated region
        $region69: #{tpu_custom_call.1} parent=47 // pred_check
          %p384 = pneg %p383
        $region70: #{tpu_custom_call.1} parent=47 // pred_check_branch
          %386 = sbr.rel (%p384) target = $region72
        $region71: #{tpu_custom_call.1} parent=47 // pred_region
          %v387 = vld [vmem:[#allocation3] sm:$0xf]
          %389 = vst [vmem:[#allocation1] ss:$4 sm:$0xff] %v387
          %v390 = vld.sshfl [vmem:[#allocation1] sm:$0xff pattern:$0x73625140]
          %v391 = vld.sshfl [vmem:[#allocation1 + $0x8] sm:$0xff pattern:$0x73625140]
          %v394 = vpack.c.bf16 %v390, %v390
          %v395 = vpack.c.bf16 %v391, %v391
          %v396 = vld [vmem:[#allocation6] sm:$0xf]
          %v397 = vld [vmem:[#allocation6 + $0x4] sm:$0xf]
          %v398 = vld [vmem:[#allocation6 + $0x8] sm:$0xf]
          %v399 = vld [vmem:[#allocation6 + $0xc] sm:$0xf]
          %v400 = vld [vmem:[#allocation6 + $0x10] sm:$0xf]
          %v401 = vld [vmem:[#allocation6 + $0x14] sm:$0xf]
          %v402 = vld [vmem:[#allocation6 + $0x18] sm:$0xf]
          %v403 = vld [vmem:[#allocation6 + $0x1c] sm:$0xf]
          %v404 = vld [vmem:[#allocation6 + $0x20] sm:$0xf]
          %v405 = vld [vmem:[#allocation6 + $0x24] sm:$0xf]
          %v406 = vld [vmem:[#allocation6 + $0x28] sm:$0xf]
          %v407 = vld [vmem:[#allocation6 + $0x2c] sm:$0xf]
          %v408 = vld [vmem:[#allocation6 + $0x30] sm:$0xf]
          %v409 = vld [vmem:[#allocation6 + $0x34] sm:$0xf]
          %v410 = vld [vmem:[#allocation6 + $0x38] sm:$0xf]
          %v411 = vld [vmem:[#allocation6 + $0x3c] sm:$0xf]
          %v412 = vld [vmem:[#allocation6 + $0x40] sm:$0xf]
          %v413 = vld [vmem:[#allocation6 + $0x44] sm:$0xf]
          %v414 = vld [vmem:[#allocation6 + $0x48] sm:$0xf]
          %v415 = vld [vmem:[#allocation6 + $0x4c] sm:$0xf]
          %v416 = vld [vmem:[#allocation6 + $0x50] sm:$0xf]
          %v417 = vld [vmem:[#allocation6 + $0x54] sm:$0xf]
          %v418 = vld [vmem:[#allocation6 + $0x58] sm:$0xf]
          %v419 = vld [vmem:[#allocation6 + $0x5c] sm:$0xf]
          %v420 = vld [vmem:[#allocation6 + $0x60] sm:$0xf]
          %v421 = vld [vmem:[#allocation6 + $0x64] sm:$0xf]
          %v422 = vld [vmem:[#allocation6 + $0x68] sm:$0xf]
          %v423 = vld [vmem:[#allocation6 + $0x6c] sm:$0xf]
          %v424 = vld [vmem:[#allocation6 + $0x70] sm:$0xf]
          %v425 = vld [vmem:[#allocation6 + $0x74] sm:$0xf]
          %v426 = vld [vmem:[#allocation6 + $0x78] sm:$0xf]
          %v427 = vld [vmem:[#allocation6 + $0x7c] sm:$0xf]
          %v428 = vld [vmem:[%s2] sm:$0x1]
          %v430 = vperm.slane %v428, 0
          %v464 = vunpack.c.l.b16 %v396
          %v465 = vunpack.c.l.b16 %v397
          %v466 = vunpack.c.l.b16 %v398
          %v467 = vunpack.c.l.b16 %v399
          %v468 = vunpack.c.l.b16 %v400
          %v469 = vunpack.c.l.b16 %v401
          %v470 = vunpack.c.l.b16 %v402
          %v471 = vunpack.c.l.b16 %v403
          %v472 = vunpack.c.l.b16 %v404
          %v473 = vunpack.c.l.b16 %v405
          %v474 = vunpack.c.l.b16 %v406
          %v475 = vunpack.c.l.b16 %v407
          %v476 = vunpack.c.l.b16 %v408
          %v477 = vunpack.c.l.b16 %v409
          %v478 = vunpack.c.l.b16 %v410
          %v479 = vunpack.c.l.b16 %v411
          %v480 = vunpack.c.l.b16 %v412
          %v481 = vunpack.c.l.b16 %v413
          %v482 = vunpack.c.l.b16 %v414
          %v483 = vunpack.c.l.b16 %v415
          %v484 = vunpack.c.l.b16 %v416
          %v485 = vunpack.c.l.b16 %v417
          %v486 = vunpack.c.l.b16 %v418
          %v487 = vunpack.c.l.b16 %v419
          %v488 = vunpack.c.l.b16 %v420
          %v489 = vunpack.c.l.b16 %v421
          %v490 = vunpack.c.l.b16 %v422
          %v491 = vunpack.c.l.b16 %v423
          %v492 = vunpack.c.l.b16 %v424
          %v493 = vunpack.c.l.b16 %v425
          %v494 = vunpack.c.l.b16 %v426
          %v495 = vunpack.c.l.b16 %v427
          %v496 = vpack.c.b16 %v465, %v464
          %v497 = vpack.c.b16 %v467, %v466
          %v498 = vpack.c.b16 %v469, %v468
          %v499 = vpack.c.b16 %v471, %v470
          %v500 = vpack.c.b16 %v473, %v472
          %v501 = vpack.c.b16 %v475, %v474
          %v502 = vpack.c.b16 %v477, %v476
          %v503 = vpack.c.b16 %v479, %v478
          %v504 = vpack.c.b16 %v481, %v480
          %v505 = vpack.c.b16 %v483, %v482
          %v506 = vpack.c.b16 %v485, %v484
          %v507 = vpack.c.b16 %v487, %v486
          %v508 = vpack.c.b16 %v489, %v488
          %v509 = vpack.c.b16 %v491, %v490
          %v510 = vpack.c.b16 %v493, %v492
          %v511 = vpack.c.b16 %v495, %v494
          %528 = vmatpush.bf16.msra.mxu0 %v503
          %529 = vmatpush.bf16.msra.mxu0 %v502
          %530 = vmatpush.bf16.msra.mxu0 %v501
          %531 = vmatpush.bf16.msra.mxu0 %v500
          %532 = vmatpush.bf16.msra.mxu0 %v499
          %533 = vmatpush.bf16.msra.mxu0 %v498
          %534 = vmatpush.bf16.msra.mxu0 %v497
          %535 = vmatpush.bf16.msra.mxu0 %v496
          %536 = vmatmul.bf16.gmra.mxu0 %v394
          %v537 = vpop.f32.mrf.mxu0
          %v538 = vadd.f32 %v430, %v537
          %v539 = vpop.f32.mrf.mxu0
          %540 = vdwg.mxu0
          %541 = vmatpush.bf16.msra.mxu0 %v511
          %542 = vmatpush.bf16.msra.mxu0 %v510
          %543 = vmatpush.bf16.msra.mxu0 %v509
          %544 = vmatpush.bf16.msra.mxu0 %v508
          %545 = vmatpush.bf16.msra.mxu0 %v507
          %546 = vmatpush.bf16.msra.mxu0 %v506
          %547 = vmatpush.bf16.msra.mxu0 %v505
          %548 = vmatpush.bf16.msra.mxu0 %v504
          %549 = vmatmul.bf16.gmra.mxu0 %v395
          %v550 = vpop.f32.mrf.mxu0
          %v551 = vadd.f32 %v538, %v550
          %v552 = vpop.f32.mrf.mxu0
          %553 = vdwg.mxu0
          %v554 = vxor.u32 %v551, 2147483648
          %v555 = vmul.f32 %v554, 1.442695
          %v556 = vpow.pop %v555
          %v557 = vadd.f32 %v556, 1.0
          %v558 = vrcp.pop %v557
          %v559 = vmul.f32 %v557, %v558
          %v560 = vsub.f32 1.0, %v559
          %v561 = vmul.f32 %v558, %v560
          %v562 = vadd.f32 %v558, %v561
          %vm563 = vweird.f32 %v557
          %vm564 = vweird.f32 %v558
          %vm565 = vmor %vm563, %vm564
          %v566 = vsel %vm565, %v558, %v562
          %v567 = vand.u32 2147483647, %v557
          %vm568 = vcmp.eq.f32.partialorder %v567, 8.507059e+37
          %v569 = vand.u32 %v557, 2147483648
          %v570 = vor.u32 1.1754944e-38, %v569
          %v571 = vsel %vm568, %v570, %v566
          %v572 = vmul.f32 1.0, %v571
          %v573 = vmul.f32 %v551, %v572
          %v574 = vpack.c.bf16 %v573, %v573
          %v575 = vld [vmem:[#allocation8] sm:$0xf]
          %v576 = vld [vmem:[#allocation8 + $0x4] sm:$0xf]
          %v577 = vld [vmem:[#allocation8 + $0x8] sm:$0xf]
          %v578 = vld [vmem:[#allocation8 + $0xc] sm:$0xf]
          %v579 = vld [vmem:[#allocation8 + $0x10] sm:$0xf]
          %v580 = vld [vmem:[#allocation8 + $0x14] sm:$0xf]
          %v581 = vld [vmem:[#allocation8 + $0x18] sm:$0xf]
          %v582 = vld [vmem:[#allocation8 + $0x1c] sm:$0xf]
          %v583 = vld [vmem:[#allocation8 + $0x20] sm:$0xf]
          %v584 = vld [vmem:[#allocation8 + $0x24] sm:$0xf]
          %v585 = vld [vmem:[#allocation8 + $0x28] sm:$0xf]
          %v586 = vld [vmem:[#allocation8 + $0x2c] sm:$0xf]
          %v587 = vld [vmem:[#allocation8 + $0x30] sm:$0xf]
          %v588 = vld [vmem:[#allocation8 + $0x34] sm:$0xf]
          %v589 = vld [vmem:[#allocation8 + $0x38] sm:$0xf]
          %v590 = vld [vmem:[#allocation8 + $0x3c] sm:$0xf]
          %v591 = vld [vmem:[%s4] sm:$0x1]
          %v593 = vperm.slane %v591, 0
          %v611 = vunpack.c.l.b16 %v575
          %v612 = vunpack.c.l.b16 %v576
          %v613 = vunpack.c.l.b16 %v577
          %v614 = vunpack.c.l.b16 %v578
          %v615 = vunpack.c.l.b16 %v579
          %v616 = vunpack.c.l.b16 %v580
          %v617 = vunpack.c.l.b16 %v581
          %v618 = vunpack.c.l.b16 %v582
          %v619 = vunpack.c.l.b16 %v583
          %v620 = vunpack.c.l.b16 %v584
          %v621 = vunpack.c.l.b16 %v585
          %v622 = vunpack.c.l.b16 %v586
          %v623 = vunpack.c.l.b16 %v587
          %v624 = vunpack.c.l.b16 %v588
          %v625 = vunpack.c.l.b16 %v589
          %v626 = vunpack.c.l.b16 %v590
          %v627 = vpack.c.b16 %v612, %v611
          %v628 = vpack.c.b16 %v614, %v613
          %v629 = vpack.c.b16 %v616, %v615
          %v630 = vpack.c.b16 %v618, %v617
          %v631 = vpack.c.b16 %v620, %v619
          %v632 = vpack.c.b16 %v622, %v621
          %v633 = vpack.c.b16 %v624, %v623
          %v634 = vpack.c.b16 %v626, %v625
          %643 = vmatpush.bf16.msra.mxu0 %v634
          %644 = vmatpush.bf16.msra.mxu0 %v633
          %645 = vmatpush.bf16.msra.mxu0 %v632
          %646 = vmatpush.bf16.msra.mxu0 %v631
          %647 = vmatpush.bf16.msra.mxu0 %v630
          %648 = vmatpush.bf16.msra.mxu0 %v629
          %649 = vmatpush.bf16.msra.mxu0 %v628
          %650 = vmatpush.bf16.msra.mxu0 %v627
          %651 = vmatmul.bf16.gmra.mxu0 %v574
          %v652 = vpop.f32.mrf.mxu0
          %v653 = vadd.f32 %v593, %v652
          %v654 = vpop.f32.mrf.mxu0
          %655 = vdwg.mxu0
          %v656 = vxor.u32 %v653, 2147483648
          %v657 = vmul.f32 %v656, 1.442695
          %v658 = vpow.pop %v657
          %v659 = vadd.f32 %v658, 1.0
          %v660 = vrcp.pop %v659
          %v661 = vmul.f32 %v659, %v660
          %v662 = vsub.f32 1.0, %v661
          %v663 = vmul.f32 %v660, %v662
          %v664 = vadd.f32 %v660, %v663
          %vm665 = vweird.f32 %v659
          %vm666 = vweird.f32 %v660
          %vm667 = vmor %vm665, %vm666
          %v668 = vsel %vm667, %v660, %v664
          %v669 = vand.u32 2147483647, %v659
          %vm670 = vcmp.eq.f32.partialorder %v669, 8.507059e+37
          %v671 = vand.u32 %v659, 2147483648
          %v672 = vor.u32 1.1754944e-38, %v671
          %v673 = vsel %vm670, %v672, %v668
          %v674 = vmul.f32 1.0, %v673
          %v675 = vmul.f32 %v653, %v674
          %676 = vst [vmem:[#allocation2] sm:$0x3] %v675
        $region72: #{tpu_custom_call.1} parent=47 // pred_fallthru
          _
        %v677 = vld [vmem:[#allocation2] sm:$0x3]
        %v678 = vpack.c.bf16 %v677, %v677
        %v679 = vld [vmem:[%s336] sm:$0xff]
        %v680 = vld [vmem:[%s336 + $0x8] sm:$0xff]
        %v681 = vld [vmem:[%s336 + $0x10] sm:$0xff]
        %v682 = vld [vmem:[%s336 + $0x18] sm:$0xff]
        %v683 = vld [vmem:[%s336 + $0x20] sm:$0xff]
        %v684 = vld [vmem:[%s336 + $0x28] sm:$0xff]
        %v685 = vld [vmem:[%s336 + $0x30] sm:$0xff]
        %v686 = vld [vmem:[%s336 + $0x38] sm:$0xff]
        %v687 = vld [vmem:[%s336 + $0x40] sm:$0xff]
        %v688 = vld [vmem:[%s336 + $0x48] sm:$0xff]
        %v689 = vld [vmem:[%s336 + $0x50] sm:$0xff]
        %v690 = vld [vmem:[%s336 + $0x58] sm:$0xff]
        %v691 = vld [vmem:[%s336 + $0x60] sm:$0xff]
        %v692 = vld [vmem:[%s336 + $0x68] sm:$0xff]
        %v693 = vld [vmem:[%s336 + $0x70] sm:$0xff]
        %v694 = vld [vmem:[%s336 + $0x78] sm:$0xff]
        %v695 = vld [vmem:[%s336 + $0x80] sm:$0xff]
        %v696 = vld [vmem:[%s336 + $0x88] sm:$0xff]
        %v697 = vld [vmem:[%s336 + $0x90] sm:$0xff]
        %v698 = vld [vmem:[%s336 + $0x98] sm:$0xff]
        %v699 = vld [vmem:[%s336 + $0xa0] sm:$0xff]
        %v700 = vld [vmem:[%s336 + $0xa8] sm:$0xff]
        %v701 = vld [vmem:[%s336 + $0xb0] sm:$0xff]
        %v702 = vld [vmem:[%s336 + $0xb8] sm:$0xff]
        %v703 = vld [vmem:[%s336 + $0xc0] sm:$0xff]
        %v704 = vld [vmem:[%s336 + $0xc8] sm:$0xff]
        %v705 = vld [vmem:[%s336 + $0xd0] sm:$0xff]
        %v706 = vld [vmem:[%s336 + $0xd8] sm:$0xff]
        %v707 = vld [vmem:[%s336 + $0xe0] sm:$0xff]
        %v708 = vld [vmem:[%s336 + $0xe8] sm:$0xff]
        %v709 = vld [vmem:[%s336 + $0xf0] sm:$0xff]
        %v710 = vld [vmem:[%s336 + $0xf8] sm:$0xff]
        %v711 = vld [vmem:[%s336 + $0x100] sm:$0xff]
        %v712 = vld [vmem:[%s336 + $0x108] sm:$0xff]
        %v713 = vld [vmem:[%s336 + $0x110] sm:$0xff]
        %v714 = vld [vmem:[%s336 + $0x118] sm:$0xff]
        %v715 = vld [vmem:[%s336 + $0x120] sm:$0xff]
        %v716 = vld [vmem:[%s336 + $0x128] sm:$0xff]
        %v717 = vld [vmem:[%s336 + $0x130] sm:$0xff]
        %v718 = vld [vmem:[%s336 + $0x138] sm:$0xff]
        %v719 = vld [vmem:[%s336 + $0x140] sm:$0xff]
        %v720 = vld [vmem:[%s336 + $0x148] sm:$0xff]
        %v721 = vld [vmem:[%s336 + $0x150] sm:$0xff]
        %v722 = vld [vmem:[%s336 + $0x158] sm:$0xff]
        %v723 = vld [vmem:[%s336 + $0x160] sm:$0xff]
        %v724 = vld [vmem:[%s336 + $0x168] sm:$0xff]
        %v725 = vld [vmem:[%s336 + $0x170] sm:$0xff]
        %v726 = vld [vmem:[%s336 + $0x178] sm:$0xff]
        %v727 = vld [vmem:[%s346] sm:$0x3f]
        %v729 = vperm.slane %v727, 0
        %v730 = vperm.slane %v727, 1
        %v731 = vperm.slane %v727, 2
        %v732 = vperm.slane %v727, 3
        %v733 = vperm.slane %v727, 4
        %v734 = vperm.slane %v727, 5
        %v789 = vunpack.c.l.b16 %v679
        %v790 = vunpack.c.h.b16 %v679
        %v791 = vunpack.c.l.b16 %v680
        %v792 = vunpack.c.h.b16 %v680
        %v793 = vunpack.c.l.b16 %v681
        %v794 = vunpack.c.h.b16 %v681
        %v795 = vunpack.c.l.b16 %v682
        %v796 = vunpack.c.h.b16 %v682
        %v797 = vunpack.c.l.b16 %v683
        %v798 = vunpack.c.h.b16 %v683
        %v799 = vunpack.c.l.b16 %v684
        %v800 = vunpack.c.h.b16 %v684
        %v801 = vunpack.c.l.b16 %v685
        %v802 = vunpack.c.h.b16 %v685
        %v803 = vunpack.c.l.b16 %v686
        %v804 = vunpack.c.h.b16 %v686
        %v805 = vunpack.c.l.b16 %v687
        %v806 = vunpack.c.h.b16 %v687
        %v807 = vunpack.c.l.b16 %v688
        %v808 = vunpack.c.h.b16 %v688
        %v809 = vunpack.c.l.b16 %v689
        %v810 = vunpack.c.h.b16 %v689
        %v811 = vunpack.c.l.b16 %v690
        %v812 = vunpack.c.h.b16 %v690
        %v813 = vunpack.c.l.b16 %v691
        %v814 = vunpack.c.h.b16 %v691
        %v815 = vunpack.c.l.b16 %v692
        %v816 = vunpack.c.h.b16 %v692
        %v817 = vunpack.c.l.b16 %v693
        %v818 = vunpack.c.h.b16 %v693
        %v819 = vunpack.c.l.b16 %v694
        %v820 = vunpack.c.h.b16 %v694
        %v821 = vunpack.c.l.b16 %v695
        %v822 = vunpack.c.h.b16 %v695
        %v823 = vunpack.c.l.b16 %v696
        %v824 = vunpack.c.h.b16 %v696
        %v825 = vunpack.c.l.b16 %v697
        %v826 = vunpack.c.h.b16 %v697
        %v827 = vunpack.c.l.b16 %v698
        %v828 = vunpack.c.h.b16 %v698
        %v829 = vunpack.c.l.b16 %v699
        %v830 = vunpack.c.h.b16 %v699
        %v831 = vunpack.c.l.b16 %v700
        %v832 = vunpack.c.h.b16 %v700
        %v833 = vunpack.c.l.b16 %v701
        %v834 = vunpack.c.h.b16 %v701
        %v835 = vunpack.c.l.b16 %v702
        %v836 = vunpack.c.h.b16 %v702
        %v837 = vunpack.c.l.b16 %v703
        %v838 = vunpack.c.h.b16 %v703
        %v839 = vunpack.c.l.b16 %v704
        %v840 = vunpack.c.h.b16 %v704
        %v841 = vunpack.c.l.b16 %v705
        %v842 = vunpack.c.h.b16 %v705
        %v843 = vunpack.c.l.b16 %v706
        %v844 = vunpack.c.h.b16 %v706
        %v845 = vunpack.c.l.b16 %v707
        %v846 = vunpack.c.h.b16 %v707
        %v847 = vunpack.c.l.b16 %v708
        %v848 = vunpack.c.h.b16 %v708
        %v849 = vunpack.c.l.b16 %v709
        %v850 = vunpack.c.h.b16 %v709
        %v851 = vunpack.c.l.b16 %v710
        %v852 = vunpack.c.h.b16 %v710
        %v853 = vunpack.c.l.b16 %v711
        %v854 = vunpack.c.h.b16 %v711
        %v855 = vunpack.c.l.b16 %v712
        %v856 = vunpack.c.h.b16 %v712
        %v857 = vunpack.c.l.b16 %v713
        %v858 = vunpack.c.h.b16 %v713
        %v859 = vunpack.c.l.b16 %v714
        %v860 = vunpack.c.h.b16 %v714
        %v861 = vunpack.c.l.b16 %v715
        %v862 = vunpack.c.h.b16 %v715
        %v863 = vunpack.c.l.b16 %v716
        %v864 = vunpack.c.h.b16 %v716
        %v865 = vunpack.c.l.b16 %v717
        %v866 = vunpack.c.h.b16 %v717
        %v867 = vunpack.c.l.b16 %v718
        %v868 = vunpack.c.h.b16 %v718
        %v869 = vunpack.c.l.b16 %v719
        %v870 = vunpack.c.h.b16 %v719
        %v871 = vunpack.c.l.b16 %v720
        %v872 = vunpack.c.h.b16 %v720
        %v873 = vunpack.c.l.b16 %v721
        %v874 = vunpack.c.h.b16 %v721
        %v875 = vunpack.c.l.b16 %v722
        %v876 = vunpack.c.h.b16 %v722
        %v877 = vunpack.c.l.b16 %v723
        %v878 = vunpack.c.h.b16 %v723
        %v879 = vunpack.c.l.b16 %v724
        %v880 = vunpack.c.h.b16 %v724
        %v881 = vunpack.c.l.b16 %v725
        %v882 = vunpack.c.h.b16 %v725
        %v883 = vunpack.c.l.b16 %v726
        %v884 = vunpack.c.h.b16 %v726
        %v885 = vpack.c.b16 %v795, %v789
        %v886 = vpack.c.b16 %v796, %v790
        %v887 = vpack.c.b16 %v797, %v791
        %v888 = vpack.c.b16 %v798, %v792
        %v889 = vpack.c.b16 %v799, %v793
        %v890 = vpack.c.b16 %v800, %v794
        %v891 = vpack.c.b16 %v807, %v801
        %v892 = vpack.c.b16 %v808, %v802
        %v893 = vpack.c.b16 %v809, %v803
        %v894 = vpack.c.b16 %v810, %v804
        %v895 = vpack.c.b16 %v811, %v805
        %v896 = vpack.c.b16 %v812, %v806
        %v897 = vpack.c.b16 %v819, %v813
        %v898 = vpack.c.b16 %v820, %v814
        %v899 = vpack.c.b16 %v821, %v815
        %v900 = vpack.c.b16 %v822, %v816
        %v901 = vpack.c.b16 %v823, %v817
        %v902 = vpack.c.b16 %v824, %v818
        %v903 = vpack.c.b16 %v831, %v825
        %v904 = vpack.c.b16 %v832, %v826
        %v905 = vpack.c.b16 %v833, %v827
        %v906 = vpack.c.b16 %v834, %v828
        %v907 = vpack.c.b16 %v835, %v829
        %v908 = vpack.c.b16 %v836, %v830
        %v909 = vpack.c.b16 %v843, %v837
        %v910 = vpack.c.b16 %v844, %v838
        %v911 = vpack.c.b16 %v845, %v839
        %v912 = vpack.c.b16 %v846, %v840
        %v913 = vpack.c.b16 %v847, %v841
        %v914 = vpack.c.b16 %v848, %v842
        %v915 = vpack.c.b16 %v855, %v849
        %v916 = vpack.c.b16 %v856, %v850
        %v917 = vpack.c.b16 %v857, %v851
        %v918 = vpack.c.b16 %v858, %v852
        %v919 = vpack.c.b16 %v859, %v853
        %v920 = vpack.c.b16 %v860, %v854
        %v921 = vpack.c.b16 %v867, %v861
        %v922 = vpack.c.b16 %v868, %v862
        %v923 = vpack.c.b16 %v869, %v863
        %v924 = vpack.c.b16 %v870, %v864
        %v925 = vpack.c.b16 %v871, %v865
        %v926 = vpack.c.b16 %v872, %v866
        %v927 = vpack.c.b16 %v879, %v873
        %v928 = vpack.c.b16 %v880, %v874
        %v929 = vpack.c.b16 %v881, %v875
        %v930 = vpack.c.b16 %v882, %v876
        %v931 = vpack.c.b16 %v883, %v877
        %v932 = vpack.c.b16 %v884, %v878
        %981 = vmatpush.bf16.msra.mxu0 %v927
        %982 = vmatpush.bf16.msra.mxu0 %v921
        %983 = vmatpush.bf16.msra.mxu0 %v915
        %984 = vmatpush.bf16.msra.mxu0 %v909
        %985 = vmatpush.bf16.msra.mxu0 %v903
        %986 = vmatpush.bf16.msra.mxu0 %v897
        %987 = vmatpush.bf16.msra.mxu0 %v891
        %988 = vmatpush.bf16.msra.mxu0 %v885
        %989 = vmatmul.bf16.gmra.mxu0 %v678
        %v990 = vpop.f32.mrf.mxu0
        %v991 = vadd.f32 %v729, %v990
        %v992 = vpop.f32.mrf.mxu0
        %993 = vdwg.mxu0
        %994 = vmatpush.bf16.msra.mxu0 %v928
        %995 = vmatpush.bf16.msra.mxu0 %v922
        %996 = vmatpush.bf16.msra.mxu0 %v916
        %997 = vmatpush.bf16.msra.mxu0 %v910
        %998 = vmatpush.bf16.msra.mxu0 %v904
        %999 = vmatpush.bf16.msra.mxu0 %v898
        %1000 = vmatpush.bf16.msra.mxu0 %v892
        %1001 = vmatpush.bf16.msra.mxu0 %v886
        %1002 = vmatmul.bf16.gmra.mxu0 %v678
        %v1003 = vpop.f32.mrf.mxu0
        %v1004 = vadd.f32 %v730, %v1003
        %v1005 = vpop.f32.mrf.mxu0
        %1006 = vdwg.mxu0
        %1007 = vmatpush.bf16.msra.mxu0 %v929
        %1008 = vmatpush.bf16.msra.mxu0 %v923
        %1009 = vmatpush.bf16.msra.mxu0 %v917
        %1010 = vmatpush.bf16.msra.mxu0 %v911
        %1011 = vmatpush.bf16.msra.mxu0 %v905
        %1012 = vmatpush.bf16.msra.mxu0 %v899
        %1013 = vmatpush.bf16.msra.mxu0 %v893
        %1014 = vmatpush.bf16.msra.mxu0 %v887
        %1015 = vmatmul.bf16.gmra.mxu0 %v678
        %v1016 = vpop.f32.mrf.mxu0
        %v1017 = vadd.f32 %v731, %v1016
        %v1018 = vpop.f32.mrf.mxu0
        %1019 = vdwg.mxu0
        %1020 = vmatpush.bf16.msra.mxu0 %v930
        %1021 = vmatpush.bf16.msra.mxu0 %v924
        %1022 = vmatpush.bf16.msra.mxu0 %v918
        %1023 = vmatpush.bf16.msra.mxu0 %v912
        %1024 = vmatpush.bf16.msra.mxu0 %v906
        %1025 = vmatpush.bf16.msra.mxu0 %v900
        %1026 = vmatpush.bf16.msra.mxu0 %v894
        %1027 = vmatpush.bf16.msra.mxu0 %v888
        %1028 = vmatmul.bf16.gmra.mxu0 %v678
        %v1029 = vpop.f32.mrf.mxu0
        %v1030 = vadd.f32 %v732, %v1029
        %v1031 = vpop.f32.mrf.mxu0
        %1032 = vdwg.mxu0
        %1033 = vmatpush.bf16.msra.mxu0 %v931
        %1034 = vmatpush.bf16.msra.mxu0 %v925
        %1035 = vmatpush.bf16.msra.mxu0 %v919
        %1036 = vmatpush.bf16.msra.mxu0 %v913
        %1037 = vmatpush.bf16.msra.mxu0 %v907
        %1038 = vmatpush.bf16.msra.mxu0 %v901
        %1039 = vmatpush.bf16.msra.mxu0 %v895
        %1040 = vmatpush.bf16.msra.mxu0 %v889
        %1041 = vmatmul.bf16.gmra.mxu0 %v678
        %v1042 = vpop.f32.mrf.mxu0
        %v1043 = vadd.f32 %v733, %v1042
        %v1044 = vpop.f32.mrf.mxu0
        %1045 = vdwg.mxu0
        %1046 = vmatpush.bf16.msra.mxu0 %v932
        %1047 = vmatpush.bf16.msra.mxu0 %v926
        %1048 = vmatpush.bf16.msra.mxu0 %v920
        %1049 = vmatpush.bf16.msra.mxu0 %v914
        %1050 = vmatpush.bf16.msra.mxu0 %v908
        %1051 = vmatpush.bf16.msra.mxu0 %v902
        %1052 = vmatpush.bf16.msra.mxu0 %v896
        %1053 = vmatpush.bf16.msra.mxu0 %v890
        %1054 = vmatmul.bf16.gmra.mxu0 %v678
        %v1055 = vpop.f32.mrf.mxu0
        %v1056 = vadd.f32 %v734, %v1055
        %v1057 = vpop.f32.mrf.mxu0
        %1058 = vdwg.mxu0
        %v1065 = vrot.slane %v1004, 6
        %v1066 = vrot.slane %v1017, 4
        %v1067 = vrot.slane %v1030, 2
        %v1068 = vrot.slane %v1056, 6
        %vm1069 = vcmask 1041408
        %v1070 = vsel %vm1069, %v991, %v1065
        %vm1071 = vcmask 1045508
        %v1072 = vsel %vm1071, %v1066, %v1067
        %vm1073 = vcmask 1043456
        %v1074 = vsel %vm1073, %v1070, %v1072
        %v1075 = vsel %vm1069, %v1043, %v1068
        %1078 = vst [vmem:[%s382] sm:$0xff] %v1074
        %1079 = vst [vmem:[%s382 + $0x8] sm:$0xf] %v1075
        %s1080 = sand.u32 %s191, 1
        %s1081 = scalar_lea.sflag [#allocation5], %s1080
        %s1082 = sand.u32 %s191, 1
        %s1083 = smul.addr %s1082, 12
        %s1084 = scalar_lea.vmem [#allocation12], %s1083
        // Predicated region
        $region73: #{tpu_custom_call.1} parent=47 // pred_check
          %p1085 = pneg %p201
        $region74: #{tpu_custom_call.1} parent=47 // pred_check_branch
          %1087 = sbr.rel (%p1085) target = $region76
        $region75: #{tpu_custom_call.1} parent=47 // pred_region
          %1089 = vsyncadd %s1081, 0
          %s1090 = smul.addr %s26, 6
          %s1091 = smul.addr %s1090, 2
          %s1092 = scalar_lea.hbm %s7, %s1091
          %s1094 = sshll.u32 %s1084, 4
          %s1095 = int_to_ptr.vmem [resolvable:$true] %s1094
          %s1096 = sshll.u32 %s1092, 4
          %s1097 = int_to_ptr.hbm [resolvable:$true] %s1096
          %1099 = dma.vmem_to_hbm [thread:$0]  %s1095, 192, %s1097, %s1081
        $region76: #{tpu_custom_call.1} parent=47 // pred_fallthru
          _
      $region48: #{tpu_custom_call.1} parent=5 // pred_fallthru
        _
      %p1100 = scmp.le.s32.totalorder 2, %s21
      // Predicated region
      $region77: #{tpu_custom_call.1} parent=5 // pred_check
        %p1101 = pneg %p1100
      $region78: #{tpu_custom_call.1} parent=5 // pred_check_branch
        %1103 = sbr.rel (%p1101) target = $region80
      $region79: #{tpu_custom_call.1} parent=5 // pred_region
        %s1104 = ssub.s32 %s21, 2
        // Predicated region
        $region81: #{tpu_custom_call.1} parent=79 // pred_check
          %p1105 = pneg %p207
        $region82: #{tpu_custom_call.1} parent=79 // pred_check_branch
          %1107 = sbr.rel (%p1105) target = $region84
        $region83: #{tpu_custom_call.1} parent=79 // pred_region
          %s1108 = sand.u32 %s192, 1
          %s1109 = scalar_lea.sflag [#allocation5], %s1108
          %s1110 = sand.u32 %s192, 1
          %s1111 = smul.addr %s1110, 12
          %s1112 = scalar_lea.vmem [#allocation12], %s1111
          %1114 = dma.done %s1109, 192
        $region84: #{tpu_custom_call.1} parent=79 // pred_fallthru
          _
      $region80: #{tpu_custom_call.1} parent=5 // pred_fallthru
        _
    $region6: #{tpu_custom_call.1} parent=1 // loop_footer
      %s25 = sadd.s32 1, %s21
    $region7: #{tpu_custom_call.1} parent=1 // loop_footer_branch
      %20 = sbr.rel target = $region3
    $region8: #{tpu_custom_call.1} parent=1 // loop_exit
      _
    %1115 = vsyncpa [#allocation4], 1
    %s1116 = scalar_lea.sflag [#allocation4], 1
    %1117 = vsyncpa %s1116, 1
    %1118 = vsyncpa [#allocation7], 1
    %1119 = vsyncpa [#allocation10], 1
    %s1120 = scalar_lea.sflag [#allocation10], 1
    %1121 = vsyncpa %s1120, 1
    %1122 = vsyncpa [#allocation5], 1
    %s1123 = scalar_lea.sflag [#allocation5], 1
    %1124 = vsyncpa %s1123, 1

</llo_original>
